<compile_context>
chip_gen: v6e
topology: v6e:2x2x1
jax: 0.10.0
libtpu: 0.0.40
codegen_flags: <defaults>
</compile_context>

<pallas_src>
import math

import jax
import jax.numpy as jnp
from jax.experimental import pallas as pl
from jax.experimental.pallas import tpu as pltpu


def _pos_enc_kernel(ct_ref, bt_ref, sin_ref, cos_ref):
    ct = ct_ref[...]                                              # (3, TN)  f32, TN on lanes
    bt = bt_ref[...]                                              # (F, 3)   f32
    # K=3 contraction on the MXU; result is lane-dense (F, TN) in f32.
    prod = jnp.dot(bt, ct, preferred_element_type=jnp.float32)    # (F, TN)
    sin_ref[...] = jnp.sin(prod)                                  # EUP
    cos_ref[...] = jnp.cos(prod)                                  # EUP


def _choose_tile(n, tile_n):
    """Pick a lane-aligned tile size; keep >=4 grid steps when there is enough work."""
    t = int(tile_n)
    assert t % 128 == 0, "tile_n must be a multiple of 128"
    while t >= 256 and (t // 2) % 128 == 0 and pl.cdiv(n, t) < 4:
        t //= 2
    return max(t, 128)


def pos_encoding_gaussian(coords, b_gauss_pi, *, tile_n=4096):
    """coords: (N, 3) f32; b_gauss_pi: (3, F) f32 -> (N, 3 + 2F) f32."""
    N, C = coords.shape
    assert C == 3
    F = b_gauss_pi.shape[1]
    t = _choose_tile(N, tile_n)
    grid_n = pl.cdiv(N, t)            # ragged tail handled by Pallas block masking

    coords_t = coords.T.astype(jnp.float32)   # (3, N): N on the lane axis
    b_t = b_gauss_pi.T.astype(jnp.float32)    # (F, 3)

    cost = pl.CostEstimate(
        flops=2 * 3 * N * F,
        transcendentals=2 * N * F,
        bytes_accessed=4 * (3 * N + 3 * F + 2 * F * N),
    )

    sin_t, cos_t = pl.pallas_call(
        _pos_enc_kernel,
        out_shape=(
            jax.ShapeDtypeStruct((F, N), jnp.float32),
            jax.ShapeDtypeStruct((F, N), jnp.float32),
        ),
        grid_spec=pl.GridSpec(
            grid=(grid_n,),
            in_specs=[
                pl.BlockSpec((3, t), lambda i: (0, i)),   # coords_T tile (lane-dense)
                pl.BlockSpec((F, 3), lambda i: (0, 0)),   # B_T (same block every step)
            ],
            out_specs=(
                pl.BlockSpec((F, t), lambda i: (0, i)),   # sin_T tile (lane-dense, aligned)
                pl.BlockSpec((F, t), lambda i: (0, i)),   # cos_T tile (lane-dense, aligned)
            ),
        ),
        compiler_params=pltpu.CompilerParams(
            dimension_semantics=("parallel",),
        ),
        cost_estimate=cost,
    )(coords_t, b_t)

    # Final fused (N, 3 + 2F) output assembled from the ORIGINAL coords (module semantics).
    return jnp.concatenate([coords, sin_t.T, cos_t.T], axis=-1)


if __name__ == "__main__":
    # Module hyperparameters (mirrors __init__): input_size=3, num_frequencies=(32,), freq_scale=10.0
    num_frequencies = 32
    freq_scale = 10.0

    key = jax.random.PRNGKey(0)
    k_b, k_c = jax.random.split(key)

    # Deterministic stand-in for torch.normal(0,1,(3,F)) * freq_scale
    B_gauss = jax.random.normal(k_b, (3, num_frequencies), dtype=jnp.float32) * freq_scale
    B_gauss_pi = (2.0 * math.pi) * B_gauss

    # Example input: small batch of coordinate triplets, consistent with the module's (..., 3) input.
    N = 256
    coords = jax.random.uniform(k_c, (N, 3), dtype=jnp.float32)

    out = pos_encoding_gaussian(coords, B_gauss_pi)
    out = jax.block_until_ready(out)

    # Reference in plain JAX (same semantics as the PyTorch forward).
    prod_ref = jnp.einsum("nc,cf->nf", coords, B_gauss_pi,
                          precision=jax.lax.Precision.HIGHEST)
    ref = jnp.concatenate([coords, jnp.sin(prod_ref), jnp.cos(prod_ref)], axis=-1)

    assert out.shape == (N, 3 + 2 * num_frequencies)
    assert bool(jnp.allclose(out, ref, atol=2e-4, rtol=1e-4))

    print("KERNEL_OK")
</pallas_src>

<mosaic_0001>
module attributes {stable_mosaic.version = 11 : i64} {
  func.func @_pos_enc_kernel(%arg0: i32, %arg1: memref<3x128xf32, #tpu.memory_space<vmem>>, %arg2: memref<32x3xf32, #tpu.memory_space<vmem>>, %arg3: memref<32x128xf32, #tpu.memory_space<vmem>>, %arg4: memref<32x128xf32, #tpu.memory_space<vmem>>) attributes {dimension_semantics = [#tpu.dimension_semantics<parallel>], iteration_bounds = array<i64: 2>, scalar_prefetch = 0 : i64, scratch_operands = 0 : i64, tpu.core_type = #tpu.core_type<tc>, window_params = [{transform_indices = @transform_0, window_bounds = array<i64: 3, 128>}, {pipeline_mode = #tpu.pipeline_mode<synchronous>, transform_indices = @transform_1, window_bounds = array<i64: 32, 3>}, {transform_indices = @transform_2, window_bounds = array<i64: 32, 128>}, {transform_indices = @transform_3, window_bounds = array<i64: 32, 128>}]} {
    %c0 = arith.constant 0 : index
    %c0_0 = arith.constant 0 : index
    %0 = vector.load %arg1[%c0, %c0_0] : memref<3x128xf32, #tpu.memory_space<vmem>>, vector<3x128xf32>
    %c0_1 = arith.constant 0 : index
    %c0_2 = arith.constant 0 : index
    %1 = vector.load %arg2[%c0_1, %c0_2] : memref<32x3xf32, #tpu.memory_space<vmem>>, vector<32x3xf32>
    %cst = arith.constant dense<0.000000e+00> : vector<32x128xf32>
    %2 = tpu.matmul %1, %0, %cst {dimension_numbers = #tpu.dot_dimension_numbers<[1], [0], [0], [1], [0, 0, 1, 1], [], []>} : vector<32x3xf32>, vector<3x128xf32>, vector<32x128xf32> -> vector<32x128xf32>
    %3 = math.sin %2 : vector<32x128xf32>
    %c0_3 = arith.constant 0 : index
    %c0_4 = arith.constant 0 : index
    %4 = vector.load %arg3[%c0_3, %c0_4] : memref<32x128xf32, #tpu.memory_space<vmem>>, vector<32x128xf32>
    tpu.vector_store %arg3[%c0_3, %c0_4], %3 {strides = array<i32>} : memref<32x128xf32, #tpu.memory_space<vmem>>, vector<32x128xf32>,
    %5 = math.cos %2 : vector<32x128xf32>
    %c0_5 = arith.constant 0 : index
    %c0_6 = arith.constant 0 : index
    %6 = vector.load %arg4[%c0_5, %c0_6] : memref<32x128xf32, #tpu.memory_space<vmem>>, vector<32x128xf32>
    tpu.vector_store %arg4[%c0_5, %c0_6], %5 {strides = array<i32>} : memref<32x128xf32, #tpu.memory_space<vmem>>, vector<32x128xf32>,
    return
  }
  func.func @transform_0(%arg0: i32) -> (i32, i32) {
    %c0_i32 = arith.constant 0 : i32
    %c0_i32_0 = arith.constant 0 : i32
    return %c0_i32, %arg0 : i32, i32
  }
  func.func @transform_1(%arg0: i32) -> (i32, i32) {
    %c0_i32 = arith.constant 0 : i32
    %c0_i32_0 = arith.constant 0 : i32
    %c0_i32_1 = arith.constant 0 : i32
    return %c0_i32, %c0_i32_0 : i32, i32
  }
  func.func @transform_2(%arg0: i32) -> (i32, i32) {
    %c0_i32 = arith.constant 0 : i32
    %c0_i32_0 = arith.constant 0 : i32
    return %c0_i32, %arg0 : i32, i32
  }
  func.func @transform_3(%arg0: i32) -> (i32, i32) {
    %c0_i32 = arith.constant 0 : i32
    %c0_i32_0 = arith.constant 0 : i32
    return %c0_i32, %arg0 : i32, i32
  }
}

</mosaic_0001>

<llo_original>
// kernel: tpu_custom_call.1
$region0: #{tpu_custom_call.1}
  #allocation0 [shape = 'u32[]', space=smem, size = 0x4, offset = 0x4, fixed_abs, tag = 'smem constant byte address 0x4 - core index']
  #allocation1 [shape = 'u32[144,128]{1,0:T(1,128)}', space=vmem, size = 0x12000, scoped, tag = 'internal scratch']
  %s0 = inlined_call_operand.vmem [shape: f32[3,256], index: 0, kind: input, shape index: {}]
  %s1 = inlined_call_operand.vmem [shape: f32[32,3], index: 1, kind: input, shape index: {}]
  %s2 = inlined_call_operand.hbm [shape: f32[32,256], index: 2, kind: output, shape index: {0}]
  %s3 = inlined_call_operand.hbm [shape: f32[32,256], index: 3, kind: output, shape index: {1}]
  %4 = xla_tuple %s2, %s3
  %s5 = sld [smem:[#allocation0]]
  $region49: #{tpu_custom_call.1} parent=0
    _
  %s7 = ssub.s32 1, %s5
  %s8 = scalar_select 0, %s7, %s5
  $region1: #{tpu_custom_call.1} parent=0
    #allocation2 [shape = 'u8[32768]{0}', space=vmem, size = 0x8000, scoped, tag = 'output window, operand 0']
    #allocation3 [shape = 's32[2]{0}', space=sflag, size = 0x8, scoped, tag = 'scoped memory for tpu_custom_call.1']
    #allocation4 [shape = 'u8[32768]{0}', space=vmem, size = 0x8000, scoped, tag = 'output window, operand 1']
    #allocation5 [shape = 's32[2]{0}', space=sflag, size = 0x8, scoped, tag = 'scoped memory for tpu_custom_call.1']
    %9 = vsyncpa [#allocation3], 0
    %s10 = scalar_lea.sflag [#allocation3], 1
    %11 = vsyncpa %s10, 0
    %12 = vsyncpa [#allocation5], 0
    %s13 = scalar_lea.sflag [#allocation5], 1
    %14 = vsyncpa %s13, 0
    loop: start=0, step=1, limit=4
    $region2: #{tpu_custom_call.1} parent=1 // loop_pre_header
      _
    $region3: #{tpu_custom_call.1} parent=1 // loop_header
      %s16 = sphi 0, %s20
      %p17 = scmp.ge.s32.totalorder %s16, 4
      %s26 = sphi 0, %s28
      %s29 = sphi 0, %s26
      %s30 = sphi 0, %s29
      %s46 = sphi 0, %s30
      %s50 = sphi 0, %s50
      %s52 = sphi 0, %s50
      %s53 = sphi 0, %s52
      %s67 = sphi 0, %s53
      %s73 = sphi 0, %s75
      %s76 = sphi 0, %s73
      %s77 = sphi 0, %s76
      %s93 = sphi 0, %s77
      %s99 = sphi 0, %s101
      %s102 = sphi 0, %s99
      %s103 = sphi 0, %s102
      %s119 = sphi 0, %s103
    $region4: #{tpu_custom_call.1} parent=1 // loop_header_branch
      %19 = sbr.rel (%p17) target = $region8
    $region5: #{tpu_custom_call.1} parent=1 // loop_body
      %s21 = ssub.s32 %s16, 1
      %s22 = ssub.s32 %s16, 2
      %s23 = sadd.s32 %s16, 1
      %s24 = ssub.s32 %s16, %s23
      %p25 = scmp.eq.s32.totalorder %s24, 0
      %s27 = sadd.s32 %s26, 1
      %s28 = scalar_select %p25, %s26, %s27
      %p31 = pneg %p25
      %p32 = scmp.eq.s32.totalorder %s16, 1
      %p33 = por %p31, %p32
      %p34 = scmp.ne.s32.totalorder %s26, %s29
      %p35 = scmp.eq.s32.totalorder %s16, 0
      %p36 = por %p34, %p35
      %p37 = scmp.ne.s32.totalorder %s26, %s29
      %p38 = scmp.eq.s32.totalorder %s21, 1
      %p39 = por %p37, %p38
      %p40 = scmp.ne.s32.totalorder %s29, %s30
      %p41 = scmp.eq.s32.totalorder %s21, 0
      %p42 = por %p40, %p41
      %p43 = scmp.ne.s32.totalorder %s29, %s30
      %p44 = scmp.eq.s32.totalorder %s22, 1
      %p45 = por %p43, %p44
      %p47 = scmp.ne.s32.totalorder %s30, %s46
      %p48 = scmp.eq.s32.totalorder %s22, 0
      %p49 = por %p47, %p48
      %s51 = sadd.s32 %s50, 1
      %p54 = scmp.eq.s32.totalorder %s16, 1
      %p55 = scmp.ne.s32.totalorder %s50, %s52
      %p56 = scmp.eq.s32.totalorder %s16, 0
      %p57 = por %p55, %p56
      %p58 = scmp.ne.s32.totalorder %s50, %s52
      %p59 = scmp.eq.s32.totalorder %s21, 1
      %p60 = por %p58, %p59
      %p61 = scmp.ne.s32.totalorder %s52, %s53
      %p62 = scmp.eq.s32.totalorder %s21, 0
      %p63 = por %p61, %p62
      %p64 = scmp.ne.s32.totalorder %s52, %s53
      %p65 = scmp.eq.s32.totalorder %s22, 1
      %p66 = por %p64, %p65
      %p68 = scmp.ne.s32.totalorder %s53, %s67
      %p69 = scmp.eq.s32.totalorder %s22, 0
      %p70 = por %p68, %p69
      %s71 = ssub.s32 %s16, %s23
      %p72 = scmp.eq.s32.totalorder %s71, 0
      %s74 = sadd.s32 %s73, 1
      %s75 = scalar_select %p72, %s73, %s74
      %p78 = pneg %p72
      %p79 = scmp.eq.s32.totalorder %s16, 1
      %p80 = por %p78, %p79
      %p81 = scmp.ne.s32.totalorder %s73, %s76
      %p82 = scmp.eq.s32.totalorder %s16, 0
      %p83 = por %p81, %p82
      %p84 = scmp.ne.s32.totalorder %s73, %s76
      %p85 = scmp.eq.s32.totalorder %s21, 1
      %p86 = por %p84, %p85
      %p87 = scmp.ne.s32.totalorder %s76, %s77
      %p88 = scmp.eq.s32.totalorder %s21, 0
      %p89 = por %p87, %p88
      %p90 = scmp.ne.s32.totalorder %s76, %s77
      %p91 = scmp.eq.s32.totalorder %s22, 1
      %p92 = por %p90, %p91
      %p94 = scmp.ne.s32.totalorder %s77, %s93
      %p95 = scmp.eq.s32.totalorder %s22, 0
      %p96 = por %p94, %p95
      %s97 = ssub.s32 %s16, %s23
      %p98 = scmp.eq.s32.totalorder %s97, 0
      %s100 = sadd.s32 %s99, 1
      %s101 = scalar_select %p98, %s99, %s100
      %p104 = pneg %p98
      %p105 = scmp.eq.s32.totalorder %s16, 1
      %p106 = por %p104, %p105
      %p107 = scmp.ne.s32.totalorder %s99, %s102
      %p108 = scmp.eq.s32.totalorder %s16, 0
      %p109 = por %p107, %p108
      %p110 = scmp.ne.s32.totalorder %s99, %s102
      %p111 = scmp.eq.s32.totalorder %s21, 1
      %p112 = por %p110, %p111
      %p113 = scmp.ne.s32.totalorder %s102, %s103
      %p114 = scmp.eq.s32.totalorder %s21, 0
      %p115 = por %p113, %p114
      %p116 = scmp.ne.s32.totalorder %s102, %s103
      %p117 = scmp.eq.s32.totalorder %s22, 1
      %p118 = por %p116, %p117
      %p120 = scmp.ne.s32.totalorder %s103, %s119
      %p121 = scmp.eq.s32.totalorder %s22, 0
      %p122 = por %p120, %p121
      %p123 = scmp.le.s32.totalorder 1, %s16
      %p124 = scmp.lt.s32.totalorder %s16, 3
      %p125 = pnand %p123, %p124
      %p126 = pneg %p125
      // Predicated region
      $region9: #{tpu_custom_call.1} parent=5 // pred_check
        _
      $region10: #{tpu_custom_call.1} parent=5 // pred_check_branch
        %128 = sbr.rel (%p125) target = $region12
      $region11: #{tpu_custom_call.1} parent=5 // pred_region
        %s129 = ssub.s32 %s16, 1
        // Predicated region
        $region13: #{tpu_custom_call.1} parent=11 // pred_check
          %p130 = pneg %p63
        $region14: #{tpu_custom_call.1} parent=11 // pred_check_branch
          %132 = sbr.rel (%p130) target = $region16
        $region15: #{tpu_custom_call.1} parent=11 // pred_region
          _
        $region16: #{tpu_custom_call.1} parent=11 // pred_fallthru
          _
      $region12: #{tpu_custom_call.1} parent=5 // pred_fallthru
        _
      %p133 = scmp.lt.s32.totalorder %s16, 2
      // Predicated region
      $region17: #{tpu_custom_call.1} parent=5 // pred_check
        %p134 = pneg %p133
      $region18: #{tpu_custom_call.1} parent=5 // pred_check_branch
        %136 = sbr.rel (%p134) target = $region20
      $region19: #{tpu_custom_call.1} parent=5 // pred_region
        // Predicated region
        $region21: #{tpu_custom_call.1} parent=19 // pred_check
          %p137 = pneg %p36
        $region22: #{tpu_custom_call.1} parent=19 // pred_check_branch
          %139 = sbr.rel (%p137) target = $region24
        $region23: #{tpu_custom_call.1} parent=19 // pred_region
          %p140 = scmp.lt.s32.totalorder %s16, 1
          %s141 = scalar_select %p140, %s16, 1
          %s142 = smul.addr %s141, 4
          %s143 = scalar_lea.vmem %s0, %s142
        $region24: #{tpu_custom_call.1} parent=19 // pred_fallthru
          _
      $region20: #{tpu_custom_call.1} parent=5 // pred_fallthru
        _
      %p144 = scmp.le.s32.totalorder 1, %s16
      %p145 = scmp.lt.s32.totalorder %s16, 3
      %p146 = pnand %p144, %p145
      %p147 = pneg %p146
      // Predicated region
      $region25: #{tpu_custom_call.1} parent=5 // pred_check
        _
      $region26: #{tpu_custom_call.1} parent=5 // pred_check_branch
        %149 = sbr.rel (%p146) target = $region28
      $region27: #{tpu_custom_call.1} parent=5 // pred_region
        %s150 = ssub.s32 %s16, 1
        %p151 = scmp.lt.s32.totalorder %s21, 1
        %s152 = scalar_select %p151, %s21, 1
        %s153 = smul.addr %s152, 4
        %s154 = scalar_lea.vmem %s0, %s153
        %p155 = pneg %p42
        %p156 = pneg %p39
        %p157 = pneg %p63
        %p158 = pneg %p60
        %p159 = pneg %p89
        %p160 = pneg %p86
        %s161 = sand.u32 %s76, 1
        %s162 = scalar_lea.sflag [#allocation3], %s161
        %s163 = sand.u32 %s76, 1
        %s164 = smul.addr %s163, 32
        %s165 = scalar_lea.vmem [#allocation2], %s164
        %p166 = pneg %p115
        %p167 = pneg %p112
        %s168 = sand.u32 %s102, 1
        %s169 = scalar_lea.sflag [#allocation5], %s168
        %s170 = sand.u32 %s102, 1
        %s171 = smul.addr %s170, 32
        %s172 = scalar_lea.vmem [#allocation4], %s171
        %p173 = scmp.lt.s32.totalorder %s21, 1
        %s174 = scalar_select %p173, %s21, 1
        %s175 = smul.addr %s174, 4
        %s176 = scalar_lea.vmem %s0, %s175
        %v177 = vld [vmem:[%s176] sm:$0x7]
        %v178 = vld [vmem:[%s1] sm:$0xff]
        %v179 = vld [vmem:[%s1 + $0x8] sm:$0xff]
        %v180 = vld [vmem:[%s1 + $0x10] sm:$0xff]
        %v181 = vld [vmem:[%s1 + $0x18] sm:$0xff]
        %vm182 = vcmask 23552
        %v184 = vsel %vm182, %v178, 0
        %v187 = vsel %vm182, %v179, 0
        %v190 = vsel %vm182, %v180, 0
        %v193 = vsel %vm182, %v181, 0
        %vm195 = vcmask 1042432
        %v197 = vsel %vm195, %v177, 0
        %199 = vmatprep.subr.mxu0 0.0
        %200 = vmatpush1.msra.mxu0 0.0
        %201 = vmatprep.subr.mxu0 0.0
        %202 = vmatpush1.msra.mxu0 0.0
        %203 = vmatprep.subr.mxu0 0.0
        %204 = vmatpush1.msra.mxu0 0.0
        %205 = vmatprep.subr.mxu0 0.0
        %206 = vmatpush1.msra.mxu0 0.0
        %207 = vmatprep.subr.mxu0 0.0
        %208 = vmatpush1.msra.mxu0 0.0
        %209 = vmatprep.subr.mxu0 0.0
        %210 = vmatpush1.msra.mxu0 0.0
        %211 = vmatprep.subr.mxu0 0.0
        %212 = vmatpush1.msra.mxu0 0.0
        %213 = vmatprep.subr.mxu0 0.0
        %214 = vmatpush1.msra.mxu0 0.0
        %215 = vmatprep.subr.mxu0 0.0
        %216 = vmatpush1.msra.mxu0 0.0
        %217 = vmatprep.subr.mxu0 0.0
        %218 = vmatpush1.msra.mxu0 0.0
        %219 = vmatprep.subr.mxu0 0.0
        %220 = vmatpush1.msra.mxu0 0.0
        %221 = vmatprep.subr.mxu0 0.0
        %222 = vmatpush1.msra.mxu0 0.0
        %223 = vmatprep.subr.mxu0 0.0
        %224 = vmatpush1.msra.mxu0 0.0
        %225 = vmatprep.subr.mxu0 0.0
        %226 = vmatpush1.msra.mxu0 0.0
        %227 = vmatprep.subr.mxu0 0.0
        %228 = vmatpush1.msra.mxu0 0.0
        %229 = vmatprep.subr.mxu0 0.0
        %230 = vmatpush1.msra.mxu0 %v197
        %231 = vmatprep.subr.mxu0 0.0
        %232 = vmatpush2.msra.mxu0 0.0
        %233 = vmatprep.subr.mxu0 0.0
        %234 = vmatpush2.msra.mxu0 0.0
        %235 = vmatprep.subr.mxu0 0.0
        %236 = vmatpush2.msra.mxu0 0.0
        %237 = vmatprep.subr.mxu0 0.0
        %238 = vmatpush2.msra.mxu0 0.0
        %239 = vmatprep.subr.mxu0 0.0
        %240 = vmatpush2.msra.mxu0 0.0
        %241 = vmatprep.subr.mxu0 0.0
        %242 = vmatpush2.msra.mxu0 0.0
        %243 = vmatprep.subr.mxu0 0.0
        %244 = vmatpush2.msra.mxu0 0.0
        %245 = vmatprep.subr.mxu0 0.0
        %246 = vmatpush2.msra.mxu0 0.0
        %247 = vmatprep.subr.mxu0 0.0
        %248 = vmatpush2.msra.mxu0 0.0
        %249 = vmatprep.subr.mxu0 0.0
        %250 = vmatpush2.msra.mxu0 0.0
        %251 = vmatprep.subr.mxu0 0.0
        %252 = vmatpush2.msra.mxu0 0.0
        %253 = vmatprep.subr.mxu0 0.0
        %254 = vmatpush2.msra.mxu0 0.0
        %255 = vmatprep.subr.mxu0 0.0
        %256 = vmatpush2.msra.mxu0 0.0
        %257 = vmatprep.subr.mxu0 0.0
        %258 = vmatpush2.msra.mxu0 0.0
        %259 = vmatprep.subr.mxu0 0.0
        %260 = vmatpush2.msra.mxu0 0.0
        %261 = vmatprep.subr.mxu0 0.0
        %262 = vmatpush2.msra.mxu0 0.0
        %263 = vmatprep.mubr.f32.mxu0 0.0
        %264 = vmatmul.mubr.f32.gmra.mxu0 %v184
        %v265 = vpop.f32.mrf.mxu0
        %v266 = vadd.f32 0.0, %v265
        %v267 = vpop.f32.mrf.mxu0
        %268 = vmatprep.mubr.f32.mxu0 0.0
        %269 = vmatmul.mubr.f32.gmra.mxu0 %v187
        %v270 = vpop.f32.mrf.mxu0
        %v271 = vadd.f32 0.0, %v270
        %v272 = vpop.f32.mrf.mxu0
        %273 = vmatprep.mubr.f32.mxu0 0.0
        %274 = vmatmul.mubr.f32.gmra.mxu0 %v190
        %v275 = vpop.f32.mrf.mxu0
        %v276 = vadd.f32 0.0, %v275
        %v277 = vpop.f32.mrf.mxu0
        %278 = vmatprep.mubr.f32.mxu0 0.0
        %279 = vmatmul.mubr.f32.gmra.mxu0 %v193
        %v280 = vpop.f32.mrf.mxu0
        %v281 = vadd.f32 0.0, %v280
        %v282 = vpop.f32.mrf.mxu0
        %283 = vdwg.mxu0
        %v284 = vand.u32 2147483647, %v266
        %vm285 = vcmp.le.f32.partialorder %v284, 0.7853982
        %vm286 = vcmp.lt.s32.totalorder %v266, 0
        %v287 = vand.u32 %v266, 2139095040
        %v288 = vshrl.u32 %v287, 23
        %v289 = vsub.s32 %v288, 127
        %v290 = vand.u32 2147483647, %v266
        %v291 = vand.u32 %v290, 8388607
        %v292 = vor.u32 %v291, 8388608
        %v293 = vsub.s32 0, %v292
        %v294 = vadd.s32 %v289, 1
        %vm295 = vcmp.gt.s32.totalorder %v294, 0
        %v296 = vsel %vm295, %v294, 0
        %v297 = vshrl.u32 %v296, 5
        %v298 = vand.u32 %v296, 31
        %v299 = vsub.s32 32, %v298
        %v300 = vshrl.u32 683565275, %v299
        %v301 = vshll.u32 683565275, %v298
        %v302 = vshrl.u32 2475754826, %v299
        %v303 = vor.u32 %v301, %v302
        %v304 = vshll.u32 2475754826, %v298
        %v305 = vshrl.u32 2131351028, %v299
        %v306 = vor.u32 %v304, %v305
        %v307 = vshll.u32 2131351028, %v298
        %v308 = vshrl.u32 2102212464, %v299
        %v309 = vor.u32 %v307, %v308
        %v310 = vshll.u32 2102212464, %v298
        %v311 = vshrl.u32 920167782, %v299
        %v312 = vor.u32 %v310, %v311
        %v313 = vshll.u32 920167782, %v298
        %v314 = vshrl.u32 1326507024, %v299
        %v315 = vor.u32 %v313, %v314
        %vm316 = vcmp.lt.s32.totalorder %v297, 1
        %vm317 = vcmp.lt.s32.totalorder %v297, 2
        %vm318 = vcmp.lt.s32.totalorder %v297, 3
        %vm319 = vcmp.lt.s32.totalorder %v297, 4
        %v320 = vsel %vm316, %v300, %v303
        %v321 = vsel %vm319, %v309, 2102212464
        %v322 = vsel %vm318, %v306, %v321
        %v323 = vsel %vm317, %v320, %v322
        %v324 = vsel %vm316, %v303, %v306
        %v325 = vsel %vm319, %v312, 920167782
        %v326 = vsel %vm318, %v309, %v325
        %v327 = vsel %vm317, %v324, %v326
        %v328 = vsel %vm316, %v306, %v309
        %v329 = vsel %vm319, %v315, 1326507024
        %v330 = vsel %vm318, %v312, %v329
        %v331 = vsel %vm317, %v328, %v330
        %v332 = vshll.u32 %v292, 8
        %v333 = vmul.u32.u64.compose %v332, %v331
        %v334 = vextract.low.u32 %v333
        %v335 = vextract.high.u32 %v333
        %v336 = vmul.u32.u64.compose %v332, %v327
        %v337 = vextract.low.u32 %v336
        %v338 = vextract.high.u32 %v336
        %v339 = vmul.u32 %v332, %v323
        %v340 = vadd.s32 %v335, %v337
        %vm341 = vc.u32 %v335, %v337
        %v342 = vadd.s32 %v338, 1
        %v343 = vsel %vm341, %v342, %v338
        %v344 = vadd.s32 %v339, %v343
        %v345 = vadd.s32 %v344, 536870912
        %v346 = vshrl.u32 %v345, 30
        %v347 = vshll.u32 %v346, 30
        %v348 = vsub.s32 %v344, %v347
        %vm349 = vcmp.lt.s32.totalorder %v348, 0
        %v350 = vsub.s32 0, %v348
        %v351 = vsel %vm349, %v350, %v348
        %v352 = vclz %v351
        %v353 = vsub.s32 %v352, 2
        %vm354 = vcmp.gt.s32.totalorder 0, %v353
        %v355 = vsel %vm354, 0, %v353
        %v356 = vsub.s32 32, %v355
        %v357 = vshll.u32 %v348, %v355
        %v358 = vshrl.u32 %v340, %v356
        %v359 = vor.u32 %v357, %v358
        %v360 = vsub.s32 4294967266, %v355
        %v361 = vadd.s32 %v360, 127
        %v362 = vshll.u32 %v361, 23
        %v363 = vor.u32 4788187, %v362
        %v364 = vand.u32 2147483647, %v363
        %v366 = vcvt.s32.f32 %v359
        %v367 = vmul.f32 %v366, %v364
        %v368 = vxor.u32 %v367, 2147483648
        %v369 = vsel %vm286, %v368, %v367
        %v370 = vsub.s32 4, %v346
        %v371 = vsel %vm286, %v370, %v346
        %v372 = vsel %vm285, %v266, %v369
        %v373 = vsel %vm285, 0, %v371
        %v374 = vcosq.f32.pop %v372
        %v375 = vsinq.f32.pop %v372
        %vm376 = vweird.f32 %v266
        %v377 = vadd.s32 %v373, 3
        %v378 = vand.u32 %v377, 3
        %vm379 = vcmp.lt.s32.totalorder %v378, 2
        %vm380 = vcmp.eq.s32.totalorder %v378, 0
        %v381 = vxor.u32 %v375, 2147483648
        %v382 = vsel %vm380, %v374, %v381
        %vm383 = vcmp.eq.s32.totalorder %v378, 2
        %v384 = vxor.u32 %v374, 2147483648
        %v385 = vsel %vm383, %v384, %v375
        %v386 = vsel %vm379, %v382, %v385
        %v387 = vsel %vm376, nan, %v386
        %v388 = vand.u32 2147483647, %v271
        %vm389 = vcmp.le.f32.partialorder %v388, 0.7853982
        %vm390 = vcmp.lt.s32.totalorder %v271, 0
        %v391 = vand.u32 %v271, 2139095040
        %v392 = vshrl.u32 %v391, 23
        %v393 = vsub.s32 %v392, 127
        %v394 = vand.u32 2147483647, %v271
        %v395 = vand.u32 %v394, 8388607
        %v396 = vor.u32 %v395, 8388608
        %v397 = vsub.s32 0, %v396
        %v398 = vadd.s32 %v393, 1
        %vm399 = vcmp.gt.s32.totalorder %v398, 0
        %v400 = vsel %vm399, %v398, 0
        %v401 = vshrl.u32 %v400, 5
        %v402 = vand.u32 %v400, 31
        %v403 = vsub.s32 32, %v402
        %v404 = vshrl.u32 683565275, %v403
        %v405 = vshll.u32 683565275, %v402
        %v406 = vshrl.u32 2475754826, %v403
        %v407 = vor.u32 %v405, %v406
        %v408 = vshll.u32 2475754826, %v402
        %v409 = vshrl.u32 2131351028, %v403
        %v410 = vor.u32 %v408, %v409
        %v411 = vshll.u32 2131351028, %v402
        %v412 = vshrl.u32 2102212464, %v403
        %v413 = vor.u32 %v411, %v412
        %v414 = vshll.u32 2102212464, %v402
        %v415 = vshrl.u32 920167782, %v403
        %v416 = vor.u32 %v414, %v415
        %v417 = vshll.u32 920167782, %v402
        %v418 = vshrl.u32 1326507024, %v403
        %v419 = vor.u32 %v417, %v418
        %vm420 = vcmp.lt.s32.totalorder %v401, 1
        %vm421 = vcmp.lt.s32.totalorder %v401, 2
        %vm422 = vcmp.lt.s32.totalorder %v401, 3
        %vm423 = vcmp.lt.s32.totalorder %v401, 4
        %v424 = vsel %vm420, %v404, %v407
        %v425 = vsel %vm423, %v413, 2102212464
        %v426 = vsel %vm422, %v410, %v425
        %v427 = vsel %vm421, %v424, %v426
        %v428 = vsel %vm420, %v407, %v410
        %v429 = vsel %vm423, %v416, 920167782
        %v430 = vsel %vm422, %v413, %v429
        %v431 = vsel %vm421, %v428, %v430
        %v432 = vsel %vm420, %v410, %v413
        %v433 = vsel %vm423, %v419, 1326507024
        %v434 = vsel %vm422, %v416, %v433
        %v435 = vsel %vm421, %v432, %v434
        %v436 = vshll.u32 %v396, 8
        %v437 = vmul.u32.u64.compose %v436, %v435
        %v438 = vextract.low.u32 %v437
        %v439 = vextract.high.u32 %v437
        %v440 = vmul.u32.u64.compose %v436, %v431
        %v441 = vextract.low.u32 %v440
        %v442 = vextract.high.u32 %v440
        %v443 = vmul.u32 %v436, %v427
        %v444 = vadd.s32 %v439, %v441
        %vm445 = vc.u32 %v439, %v441
        %v446 = vadd.s32 %v442, 1
        %v447 = vsel %vm445, %v446, %v442
        %v448 = vadd.s32 %v443, %v447
        %v449 = vadd.s32 %v448, 536870912
        %v450 = vshrl.u32 %v449, 30
        %v451 = vshll.u32 %v450, 30
        %v452 = vsub.s32 %v448, %v451
        %vm453 = vcmp.lt.s32.totalorder %v452, 0
        %v454 = vsub.s32 0, %v452
        %v455 = vsel %vm453, %v454, %v452
        %v456 = vclz %v455
        %v457 = vsub.s32 %v456, 2
        %vm458 = vcmp.gt.s32.totalorder 0, %v457
        %v459 = vsel %vm458, 0, %v457
        %v460 = vsub.s32 32, %v459
        %v461 = vshll.u32 %v452, %v459
        %v462 = vshrl.u32 %v444, %v460
        %v463 = vor.u32 %v461, %v462
        %v464 = vsub.s32 4294967266, %v459
        %v465 = vadd.s32 %v464, 127
        %v466 = vshll.u32 %v465, 23
        %v467 = vor.u32 4788187, %v466
        %v468 = vand.u32 2147483647, %v467
        %v470 = vcvt.s32.f32 %v463
        %v471 = vmul.f32 %v470, %v468
        %v472 = vxor.u32 %v471, 2147483648
        %v473 = vsel %vm390, %v472, %v471
        %v474 = vsub.s32 4, %v450
        %v475 = vsel %vm390, %v474, %v450
        %v476 = vsel %vm389, %v271, %v473
        %v477 = vsel %vm389, 0, %v475
        %v478 = vcosq.f32.pop %v476
        %v479 = vsinq.f32.pop %v476
        %vm480 = vweird.f32 %v271
        %v481 = vadd.s32 %v477, 3
        %v482 = vand.u32 %v481, 3
        %vm483 = vcmp.lt.s32.totalorder %v482, 2
        %vm484 = vcmp.eq.s32.totalorder %v482, 0
        %v485 = vxor.u32 %v479, 2147483648
        %v486 = vsel %vm484, %v478, %v485
        %vm487 = vcmp.eq.s32.totalorder %v482, 2
        %v488 = vxor.u32 %v478, 2147483648
        %v489 = vsel %vm487, %v488, %v479
        %v490 = vsel %vm483, %v486, %v489
        %v491 = vsel %vm480, nan, %v490
        %v492 = vand.u32 2147483647, %v276
        %vm493 = vcmp.le.f32.partialorder %v492, 0.7853982
        %vm494 = vcmp.lt.s32.totalorder %v276, 0
        %v495 = vand.u32 %v276, 2139095040
        %v496 = vshrl.u32 %v495, 23
        %v497 = vsub.s32 %v496, 127
        %v498 = vand.u32 2147483647, %v276
        %v499 = vand.u32 %v498, 8388607
        %v500 = vor.u32 %v499, 8388608
        %v501 = vsub.s32 0, %v500
        %v502 = vadd.s32 %v497, 1
        %vm503 = vcmp.gt.s32.totalorder %v502, 0
        %v504 = vsel %vm503, %v502, 0
        %v505 = vshrl.u32 %v504, 5
        %v506 = vand.u32 %v504, 31
        %v507 = vsub.s32 32, %v506
        %v508 = vshrl.u32 683565275, %v507
        %v509 = vshll.u32 683565275, %v506
        %v510 = vshrl.u32 2475754826, %v507
        %v511 = vor.u32 %v509, %v510
        %v512 = vshll.u32 2475754826, %v506
        %v513 = vshrl.u32 2131351028, %v507
        %v514 = vor.u32 %v512, %v513
        %v515 = vshll.u32 2131351028, %v506
        %v516 = vshrl.u32 2102212464, %v507
        %v517 = vor.u32 %v515, %v516
        %v518 = vshll.u32 2102212464, %v506
        %v519 = vshrl.u32 920167782, %v507
        %v520 = vor.u32 %v518, %v519
        %v521 = vshll.u32 920167782, %v506
        %v522 = vshrl.u32 1326507024, %v507
        %v523 = vor.u32 %v521, %v522
        %vm524 = vcmp.lt.s32.totalorder %v505, 1
        %vm525 = vcmp.lt.s32.totalorder %v505, 2
        %vm526 = vcmp.lt.s32.totalorder %v505, 3
        %vm527 = vcmp.lt.s32.totalorder %v505, 4
        %v528 = vsel %vm524, %v508, %v511
        %v529 = vsel %vm527, %v517, 2102212464
        %v530 = vsel %vm526, %v514, %v529
        %v531 = vsel %vm525, %v528, %v530
        %v532 = vsel %vm524, %v511, %v514
        %v533 = vsel %vm527, %v520, 920167782
        %v534 = vsel %vm526, %v517, %v533
        %v535 = vsel %vm525, %v532, %v534
        %v536 = vsel %vm524, %v514, %v517
        %v537 = vsel %vm527, %v523, 1326507024
        %v538 = vsel %vm526, %v520, %v537
        %v539 = vsel %vm525, %v536, %v538
        %v540 = vshll.u32 %v500, 8
        %v541 = vmul.u32.u64.compose %v540, %v539
        %v542 = vextract.low.u32 %v541
        %v543 = vextract.high.u32 %v541
        %v544 = vmul.u32.u64.compose %v540, %v535
        %v545 = vextract.low.u32 %v544
        %v546 = vextract.high.u32 %v544
        %v547 = vmul.u32 %v540, %v531
        %v548 = vadd.s32 %v543, %v545
        %vm549 = vc.u32 %v543, %v545
        %v550 = vadd.s32 %v546, 1
        %v551 = vsel %vm549, %v550, %v546
        %v552 = vadd.s32 %v547, %v551
        %v553 = vadd.s32 %v552, 536870912
        %v554 = vshrl.u32 %v553, 30
        %v555 = vshll.u32 %v554, 30
        %v556 = vsub.s32 %v552, %v555
        %vm557 = vcmp.lt.s32.totalorder %v556, 0
        %v558 = vsub.s32 0, %v556
        %v559 = vsel %vm557, %v558, %v556
        %v560 = vclz %v559
        %v561 = vsub.s32 %v560, 2
        %vm562 = vcmp.gt.s32.totalorder 0, %v561
        %v563 = vsel %vm562, 0, %v561
        %v564 = vsub.s32 32, %v563
        %v565 = vshll.u32 %v556, %v563
        %v566 = vshrl.u32 %v548, %v564
        %v567 = vor.u32 %v565, %v566
        %v568 = vsub.s32 4294967266, %v563
        %v569 = vadd.s32 %v568, 127
        %v570 = vshll.u32 %v569, 23
        %v571 = vor.u32 4788187, %v570
        %v572 = vand.u32 2147483647, %v571
        %v574 = vcvt.s32.f32 %v567
        %v575 = vmul.f32 %v574, %v572
        %v576 = vxor.u32 %v575, 2147483648
        %v577 = vsel %vm494, %v576, %v575
        %v578 = vsub.s32 4, %v554
        %v579 = vsel %vm494, %v578, %v554
        %v580 = vsel %vm493, %v276, %v577
        %v581 = vsel %vm493, 0, %v579
        %v582 = vcosq.f32.pop %v580
        %v583 = vsinq.f32.pop %v580
        %vm584 = vweird.f32 %v276
        %v585 = vadd.s32 %v581, 3
        %v586 = vand.u32 %v585, 3
        %vm587 = vcmp.lt.s32.totalorder %v586, 2
        %vm588 = vcmp.eq.s32.totalorder %v586, 0
        %v589 = vxor.u32 %v583, 2147483648
        %v590 = vsel %vm588, %v582, %v589
        %vm591 = vcmp.eq.s32.totalorder %v586, 2
        %v592 = vxor.u32 %v582, 2147483648
        %v593 = vsel %vm591, %v592, %v583
        %v594 = vsel %vm587, %v590, %v593
        %v595 = vsel %vm584, nan, %v594
        %v596 = vand.u32 2147483647, %v281
        %vm597 = vcmp.le.f32.partialorder %v596, 0.7853982
        %vm598 = vcmp.lt.s32.totalorder %v281, 0
        %v599 = vand.u32 %v281, 2139095040
        %v600 = vshrl.u32 %v599, 23
        %v601 = vsub.s32 %v600, 127
        %v602 = vand.u32 2147483647, %v281
        %v603 = vand.u32 %v602, 8388607
        %v604 = vor.u32 %v603, 8388608
        %v605 = vsub.s32 0, %v604
        %v606 = vadd.s32 %v601, 1
        %vm607 = vcmp.gt.s32.totalorder %v606, 0
        %v608 = vsel %vm607, %v606, 0
        %v609 = vshrl.u32 %v608, 5
        %v610 = vand.u32 %v608, 31
        %v611 = vsub.s32 32, %v610
        %v612 = vshrl.u32 683565275, %v611
        %v613 = vshll.u32 683565275, %v610
        %v614 = vshrl.u32 2475754826, %v611
        %v615 = vor.u32 %v613, %v614
        %v616 = vshll.u32 2475754826, %v610
        %v617 = vshrl.u32 2131351028, %v611
        %v618 = vor.u32 %v616, %v617
        %v619 = vshll.u32 2131351028, %v610
        %v620 = vshrl.u32 2102212464, %v611
        %v621 = vor.u32 %v619, %v620
        %v622 = vshll.u32 2102212464, %v610
        %v623 = vshrl.u32 920167782, %v611
        %v624 = vor.u32 %v622, %v623
        %v625 = vshll.u32 920167782, %v610
        %v626 = vshrl.u32 1326507024, %v611
        %v627 = vor.u32 %v625, %v626
        %vm628 = vcmp.lt.s32.totalorder %v609, 1
        %vm629 = vcmp.lt.s32.totalorder %v609, 2
        %vm630 = vcmp.lt.s32.totalorder %v609, 3
        %vm631 = vcmp.lt.s32.totalorder %v609, 4
        %v632 = vsel %vm628, %v612, %v615
        %v633 = vsel %vm631, %v621, 2102212464
        %v634 = vsel %vm630, %v618, %v633
        %v635 = vsel %vm629, %v632, %v634
        %v636 = vsel %vm628, %v615, %v618
        %v637 = vsel %vm631, %v624, 920167782
        %v638 = vsel %vm630, %v621, %v637
        %v639 = vsel %vm629, %v636, %v638
        %v640 = vsel %vm628, %v618, %v621
        %v641 = vsel %vm631, %v627, 1326507024
        %v642 = vsel %vm630, %v624, %v641
        %v643 = vsel %vm629, %v640, %v642
        %v644 = vshll.u32 %v604, 8
        %v645 = vmul.u32.u64.compose %v644, %v643
        %v646 = vextract.low.u32 %v645
        %v647 = vextract.high.u32 %v645
        %v648 = vmul.u32.u64.compose %v644, %v639
        %v649 = vextract.low.u32 %v648
        %v650 = vextract.high.u32 %v648
        %v651 = vmul.u32 %v644, %v635
        %v652 = vadd.s32 %v647, %v649
        %vm653 = vc.u32 %v647, %v649
        %v654 = vadd.s32 %v650, 1
        %v655 = vsel %vm653, %v654, %v650
        %v656 = vadd.s32 %v651, %v655
        %v657 = vadd.s32 %v656, 536870912
        %v658 = vshrl.u32 %v657, 30
        %v659 = vshll.u32 %v658, 30
        %v660 = vsub.s32 %v656, %v659
        %vm661 = vcmp.lt.s32.totalorder %v660, 0
        %v662 = vsub.s32 0, %v660
        %v663 = vsel %vm661, %v662, %v660
        %v664 = vclz %v663
        %v665 = vsub.s32 %v664, 2
        %vm666 = vcmp.gt.s32.totalorder 0, %v665
        %v667 = vsel %vm666, 0, %v665
        %v668 = vsub.s32 32, %v667
        %v669 = vshll.u32 %v660, %v667
        %v670 = vshrl.u32 %v652, %v668
        %v671 = vor.u32 %v669, %v670
        %v672 = vsub.s32 4294967266, %v667
        %v673 = vadd.s32 %v672, 127
        %v674 = vshll.u32 %v673, 23
        %v675 = vor.u32 4788187, %v674
        %v676 = vand.u32 2147483647, %v675
        %v678 = vcvt.s32.f32 %v671
        %v679 = vmul.f32 %v678, %v676
        %v680 = vxor.u32 %v679, 2147483648
        %v681 = vsel %vm598, %v680, %v679
        %v682 = vsub.s32 4, %v658
        %v683 = vsel %vm598, %v682, %v658
        %v684 = vsel %vm597, %v281, %v681
        %v685 = vsel %vm597, 0, %v683
        %v686 = vcosq.f32.pop %v684
        %v687 = vsinq.f32.pop %v684
        %vm688 = vweird.f32 %v281
        %v689 = vadd.s32 %v685, 3
        %v690 = vand.u32 %v689, 3
        %vm691 = vcmp.lt.s32.totalorder %v690, 2
        %vm692 = vcmp.eq.s32.totalorder %v690, 0
        %v693 = vxor.u32 %v687, 2147483648
        %v694 = vsel %vm692, %v686, %v693
        %vm695 = vcmp.eq.s32.totalorder %v690, 2
        %v696 = vxor.u32 %v686, 2147483648
        %v697 = vsel %vm695, %v696, %v687
        %v698 = vsel %vm691, %v694, %v697
        %v699 = vsel %vm688, nan, %v698
        %700 = vst [vmem:[%s165] sm:$0xff] %v387
        %701 = vst [vmem:[%s165 + $0x8] sm:$0xff] %v491
        %702 = vst [vmem:[%s165 + $0x10] sm:$0xff] %v595
        %703 = vst [vmem:[%s165 + $0x18] sm:$0xff] %v699
        %v704 = vand.u32 2147483647, %v266
        %vm705 = vcmp.le.f32.partialorder %v704, 0.7853982
        %vm706 = vcmp.lt.s32.totalorder %v266, 0
        %v707 = vand.u32 %v266, 2139095040
        %v708 = vshrl.u32 %v707, 23
        %v709 = vsub.s32 %v708, 127
        %v710 = vand.u32 2147483647, %v266
        %v711 = vand.u32 %v710, 8388607
        %v712 = vor.u32 %v711, 8388608
        %v713 = vsub.s32 0, %v712
        %v714 = vadd.s32 %v709, 1
        %vm715 = vcmp.gt.s32.totalorder %v714, 0
        %v716 = vsel %vm715, %v714, 0
        %v717 = vshrl.u32 %v716, 5
        %v718 = vand.u32 %v716, 31
        %v719 = vsub.s32 32, %v718
        %v720 = vshrl.u32 683565275, %v719
        %v721 = vshll.u32 683565275, %v718
        %v722 = vshrl.u32 2475754826, %v719
        %v723 = vor.u32 %v721, %v722
        %v724 = vshll.u32 2475754826, %v718
        %v725 = vshrl.u32 2131351028, %v719
        %v726 = vor.u32 %v724, %v725
        %v727 = vshll.u32 2131351028, %v718
        %v728 = vshrl.u32 2102212464, %v719
        %v729 = vor.u32 %v727, %v728
        %v730 = vshll.u32 2102212464, %v718
        %v731 = vshrl.u32 920167782, %v719
        %v732 = vor.u32 %v730, %v731
        %v733 = vshll.u32 920167782, %v718
        %v734 = vshrl.u32 1326507024, %v719
        %v735 = vor.u32 %v733, %v734
        %vm736 = vcmp.lt.s32.totalorder %v717, 1
        %vm737 = vcmp.lt.s32.totalorder %v717, 2
        %vm738 = vcmp.lt.s32.totalorder %v717, 3
        %vm739 = vcmp.lt.s32.totalorder %v717, 4
        %v740 = vsel %vm736, %v720, %v723
        %v741 = vsel %vm739, %v729, 2102212464
        %v742 = vsel %vm738, %v726, %v741
        %v743 = vsel %vm737, %v740, %v742
        %v744 = vsel %vm736, %v723, %v726
        %v745 = vsel %vm739, %v732, 920167782
        %v746 = vsel %vm738, %v729, %v745
        %v747 = vsel %vm737, %v744, %v746
        %v748 = vsel %vm736, %v726, %v729
        %v749 = vsel %vm739, %v735, 1326507024
        %v750 = vsel %vm738, %v732, %v749
        %v751 = vsel %vm737, %v748, %v750
        %v752 = vshll.u32 %v712, 8
        %v753 = vmul.u32.u64.compose %v752, %v751
        %v754 = vextract.low.u32 %v753
        %v755 = vextract.high.u32 %v753
        %v756 = vmul.u32.u64.compose %v752, %v747
        %v757 = vextract.low.u32 %v756
        %v758 = vextract.high.u32 %v756
        %v759 = vmul.u32 %v752, %v743
        %v760 = vadd.s32 %v755, %v757
        %vm761 = vc.u32 %v755, %v757
        %v762 = vadd.s32 %v758, 1
        %v763 = vsel %vm761, %v762, %v758
        %v764 = vadd.s32 %v759, %v763
        %v765 = vadd.s32 %v764, 536870912
        %v766 = vshrl.u32 %v765, 30
        %v767 = vshll.u32 %v766, 30
        %v768 = vsub.s32 %v764, %v767
        %vm769 = vcmp.lt.s32.totalorder %v768, 0
        %v770 = vsub.s32 0, %v768
        %v771 = vsel %vm769, %v770, %v768
        %v772 = vclz %v771
        %v773 = vsub.s32 %v772, 2
        %vm774 = vcmp.gt.s32.totalorder 0, %v773
        %v775 = vsel %vm774, 0, %v773
        %v776 = vsub.s32 32, %v775
        %v777 = vshll.u32 %v768, %v775
        %v778 = vshrl.u32 %v760, %v776
        %v779 = vor.u32 %v777, %v778
        %v780 = vsub.s32 4294967266, %v775
        %v781 = vadd.s32 %v780, 127
        %v782 = vshll.u32 %v781, 23
        %v783 = vor.u32 4788187, %v782
        %v784 = vand.u32 2147483647, %v783
        %v786 = vcvt.s32.f32 %v779
        %v787 = vmul.f32 %v786, %v784
        %v788 = vxor.u32 %v787, 2147483648
        %v789 = vsel %vm706, %v788, %v787
        %v790 = vsub.s32 4, %v766
        %v791 = vsel %vm706, %v790, %v766
        %v792 = vsel %vm705, %v266, %v789
        %v793 = vsel %vm705, 0, %v791
        %v794 = vcosq.f32.pop %v792
        %v795 = vsinq.f32.pop %v792
        %vm796 = vweird.f32 %v266
        %v797 = vand.u32 %v793, 3
        %vm798 = vcmp.lt.s32.totalorder %v797, 2
        %vm799 = vcmp.eq.s32.totalorder %v797, 0
        %v800 = vxor.u32 %v795, 2147483648
        %v801 = vsel %vm799, %v794, %v800
        %vm802 = vcmp.eq.s32.totalorder %v797, 2
        %v803 = vxor.u32 %v794, 2147483648
        %v804 = vsel %vm802, %v803, %v795
        %v805 = vsel %vm798, %v801, %v804
        %v806 = vsel %vm796, nan, %v805
        %v807 = vand.u32 2147483647, %v271
        %vm808 = vcmp.le.f32.partialorder %v807, 0.7853982
        %vm809 = vcmp.lt.s32.totalorder %v271, 0
        %v810 = vand.u32 %v271, 2139095040
        %v811 = vshrl.u32 %v810, 23
        %v812 = vsub.s32 %v811, 127
        %v813 = vand.u32 2147483647, %v271
        %v814 = vand.u32 %v813, 8388607
        %v815 = vor.u32 %v814, 8388608
        %v816 = vsub.s32 0, %v815
        %v817 = vadd.s32 %v812, 1
        %vm818 = vcmp.gt.s32.totalorder %v817, 0
        %v819 = vsel %vm818, %v817, 0
        %v820 = vshrl.u32 %v819, 5
        %v821 = vand.u32 %v819, 31
        %v822 = vsub.s32 32, %v821
        %v823 = vshrl.u32 683565275, %v822
        %v824 = vshll.u32 683565275, %v821
        %v825 = vshrl.u32 2475754826, %v822
        %v826 = vor.u32 %v824, %v825
        %v827 = vshll.u32 2475754826, %v821
        %v828 = vshrl.u32 2131351028, %v822
        %v829 = vor.u32 %v827, %v828
        %v830 = vshll.u32 2131351028, %v821
        %v831 = vshrl.u32 2102212464, %v822
        %v832 = vor.u32 %v830, %v831
        %v833 = vshll.u32 2102212464, %v821
        %v834 = vshrl.u32 920167782, %v822
        %v835 = vor.u32 %v833, %v834
        %v836 = vshll.u32 920167782, %v821
        %v837 = vshrl.u32 1326507024, %v822
        %v838 = vor.u32 %v836, %v837
        %vm839 = vcmp.lt.s32.totalorder %v820, 1
        %vm840 = vcmp.lt.s32.totalorder %v820, 2
        %vm841 = vcmp.lt.s32.totalorder %v820, 3
        %vm842 = vcmp.lt.s32.totalorder %v820, 4
        %v843 = vsel %vm839, %v823, %v826
        %v844 = vsel %vm842, %v832, 2102212464
        %v845 = vsel %vm841, %v829, %v844
        %v846 = vsel %vm840, %v843, %v845
        %v847 = vsel %vm839, %v826, %v829
        %v848 = vsel %vm842, %v835, 920167782
        %v849 = vsel %vm841, %v832, %v848
        %v850 = vsel %vm840, %v847, %v849
        %v851 = vsel %vm839, %v829, %v832
        %v852 = vsel %vm842, %v838, 1326507024
        %v853 = vsel %vm841, %v835, %v852
        %v854 = vsel %vm840, %v851, %v853
        %v855 = vshll.u32 %v815, 8
        %v856 = vmul.u32.u64.compose %v855, %v854
        %v857 = vextract.low.u32 %v856
        %v858 = vextract.high.u32 %v856
        %v859 = vmul.u32.u64.compose %v855, %v850
        %v860 = vextract.low.u32 %v859
        %v861 = vextract.high.u32 %v859
        %v862 = vmul.u32 %v855, %v846
        %v863 = vadd.s32 %v858, %v860
        %vm864 = vc.u32 %v858, %v860
        %v865 = vadd.s32 %v861, 1
        %v866 = vsel %vm864, %v865, %v861
        %v867 = vadd.s32 %v862, %v866
        %v868 = vadd.s32 %v867, 536870912
        %v869 = vshrl.u32 %v868, 30
        %v870 = vshll.u32 %v869, 30
        %v871 = vsub.s32 %v867, %v870
        %vm872 = vcmp.lt.s32.totalorder %v871, 0
        %v873 = vsub.s32 0, %v871
        %v874 = vsel %vm872, %v873, %v871
        %v875 = vclz %v874
        %v876 = vsub.s32 %v875, 2
        %vm877 = vcmp.gt.s32.totalorder 0, %v876
        %v878 = vsel %vm877, 0, %v876
        %v879 = vsub.s32 32, %v878
        %v880 = vshll.u32 %v871, %v878
        %v881 = vshrl.u32 %v863, %v879
        %v882 = vor.u32 %v880, %v881
        %v883 = vsub.s32 4294967266, %v878
        %v884 = vadd.s32 %v883, 127
        %v885 = vshll.u32 %v884, 23
        %v886 = vor.u32 4788187, %v885
        %v887 = vand.u32 2147483647, %v886
        %v889 = vcvt.s32.f32 %v882
        %v890 = vmul.f32 %v889, %v887
        %v891 = vxor.u32 %v890, 2147483648
        %v892 = vsel %vm809, %v891, %v890
        %v893 = vsub.s32 4, %v869
        %v894 = vsel %vm809, %v893, %v869
        %v895 = vsel %vm808, %v271, %v892
        %v896 = vsel %vm808, 0, %v894
        %v897 = vcosq.f32.pop %v895
        %v898 = vsinq.f32.pop %v895
        %vm899 = vweird.f32 %v271
        %v900 = vand.u32 %v896, 3
        %vm901 = vcmp.lt.s32.totalorder %v900, 2
        %vm902 = vcmp.eq.s32.totalorder %v900, 0
        %v903 = vxor.u32 %v898, 2147483648
        %v904 = vsel %vm902, %v897, %v903
        %vm905 = vcmp.eq.s32.totalorder %v900, 2
        %v906 = vxor.u32 %v897, 2147483648
        %v907 = vsel %vm905, %v906, %v898
        %v908 = vsel %vm901, %v904, %v907
        %v909 = vsel %vm899, nan, %v908
        %v910 = vand.u32 2147483647, %v276
        %vm911 = vcmp.le.f32.partialorder %v910, 0.7853982
        %vm912 = vcmp.lt.s32.totalorder %v276, 0
        %v913 = vand.u32 %v276, 2139095040
        %v914 = vshrl.u32 %v913, 23
        %v915 = vsub.s32 %v914, 127
        %v916 = vand.u32 2147483647, %v276
        %v917 = vand.u32 %v916, 8388607
        %v918 = vor.u32 %v917, 8388608
        %v919 = vsub.s32 0, %v918
        %v920 = vadd.s32 %v915, 1
        %vm921 = vcmp.gt.s32.totalorder %v920, 0
        %v922 = vsel %vm921, %v920, 0
        %v923 = vshrl.u32 %v922, 5
        %v924 = vand.u32 %v922, 31
        %v925 = vsub.s32 32, %v924
        %v926 = vshrl.u32 683565275, %v925
        %v927 = vshll.u32 683565275, %v924
        %v928 = vshrl.u32 2475754826, %v925
        %v929 = vor.u32 %v927, %v928
        %v930 = vshll.u32 2475754826, %v924
        %v931 = vshrl.u32 2131351028, %v925
        %v932 = vor.u32 %v930, %v931
        %v933 = vshll.u32 2131351028, %v924
        %v934 = vshrl.u32 2102212464, %v925
        %v935 = vor.u32 %v933, %v934
        %v936 = vshll.u32 2102212464, %v924
        %v937 = vshrl.u32 920167782, %v925
        %v938 = vor.u32 %v936, %v937
        %v939 = vshll.u32 920167782, %v924
        %v940 = vshrl.u32 1326507024, %v925
        %v941 = vor.u32 %v939, %v940
        %vm942 = vcmp.lt.s32.totalorder %v923, 1
        %vm943 = vcmp.lt.s32.totalorder %v923, 2
        %vm944 = vcmp.lt.s32.totalorder %v923, 3
        %vm945 = vcmp.lt.s32.totalorder %v923, 4
        %v946 = vsel %vm942, %v926, %v929
        %v947 = vsel %vm945, %v935, 2102212464
        %v948 = vsel %vm944, %v932, %v947
        %v949 = vsel %vm943, %v946, %v948
        %v950 = vsel %vm942, %v929, %v932
        %v951 = vsel %vm945, %v938, 920167782
        %v952 = vsel %vm944, %v935, %v951
        %v953 = vsel %vm943, %v950, %v952
        %v954 = vsel %vm942, %v932, %v935
        %v955 = vsel %vm945, %v941, 1326507024
        %v956 = vsel %vm944, %v938, %v955
        %v957 = vsel %vm943, %v954, %v956
        %v958 = vshll.u32 %v918, 8
        %v959 = vmul.u32.u64.compose %v958, %v957
        %v960 = vextract.low.u32 %v959
        %v961 = vextract.high.u32 %v959
        %v962 = vmul.u32.u64.compose %v958, %v953
        %v963 = vextract.low.u32 %v962
        %v964 = vextract.high.u32 %v962
        %v965 = vmul.u32 %v958, %v949
        %v966 = vadd.s32 %v961, %v963
        %vm967 = vc.u32 %v961, %v963
        %v968 = vadd.s32 %v964, 1
        %v969 = vsel %vm967, %v968, %v964
        %v970 = vadd.s32 %v965, %v969
        %v971 = vadd.s32 %v970, 536870912
        %v972 = vshrl.u32 %v971, 30
        %v973 = vshll.u32 %v972, 30
        %v974 = vsub.s32 %v970, %v973
        %vm975 = vcmp.lt.s32.totalorder %v974, 0
        %v976 = vsub.s32 0, %v974
        %v977 = vsel %vm975, %v976, %v974
        %v978 = vclz %v977
        %v979 = vsub.s32 %v978, 2
        %vm980 = vcmp.gt.s32.totalorder 0, %v979
        %v981 = vsel %vm980, 0, %v979
        %v982 = vsub.s32 32, %v981
        %v983 = vshll.u32 %v974, %v981
        %v984 = vshrl.u32 %v966, %v982
        %v985 = vor.u32 %v983, %v984
        %v986 = vsub.s32 4294967266, %v981
        %v987 = vadd.s32 %v986, 127
        %v988 = vshll.u32 %v987, 23
        %v989 = vor.u32 4788187, %v988
        %v990 = vand.u32 2147483647, %v989
        %v992 = vcvt.s32.f32 %v985
        %v993 = vmul.f32 %v992, %v990
        %v994 = vxor.u32 %v993, 2147483648
        %v995 = vsel %vm912, %v994, %v993
        %v996 = vsub.s32 4, %v972
        %v997 = vsel %vm912, %v996, %v972
        %v998 = vsel %vm911, %v276, %v995
        %v999 = vsel %vm911, 0, %v997
        %v1000 = vcosq.f32.pop %v998
        %v1001 = vsinq.f32.pop %v998
        %vm1002 = vweird.f32 %v276
        %v1003 = vand.u32 %v999, 3
        %vm1004 = vcmp.lt.s32.totalorder %v1003, 2
        %vm1005 = vcmp.eq.s32.totalorder %v1003, 0
        %v1006 = vxor.u32 %v1001, 2147483648
        %v1007 = vsel %vm1005, %v1000, %v1006
        %vm1008 = vcmp.eq.s32.totalorder %v1003, 2
        %v1009 = vxor.u32 %v1000, 2147483648
        %v1010 = vsel %vm1008, %v1009, %v1001
        %v1011 = vsel %vm1004, %v1007, %v1010
        %v1012 = vsel %vm1002, nan, %v1011
        %v1013 = vand.u32 2147483647, %v281
        %vm1014 = vcmp.le.f32.partialorder %v1013, 0.7853982
        %vm1015 = vcmp.lt.s32.totalorder %v281, 0
        %v1016 = vand.u32 %v281, 2139095040
        %v1017 = vshrl.u32 %v1016, 23
        %v1018 = vsub.s32 %v1017, 127
        %v1019 = vand.u32 2147483647, %v281
        %v1020 = vand.u32 %v1019, 8388607
        %v1021 = vor.u32 %v1020, 8388608
        %v1022 = vsub.s32 0, %v1021
        %v1023 = vadd.s32 %v1018, 1
        %vm1024 = vcmp.gt.s32.totalorder %v1023, 0
        %v1025 = vsel %vm1024, %v1023, 0
        %v1026 = vshrl.u32 %v1025, 5
        %v1027 = vand.u32 %v1025, 31
        %v1028 = vsub.s32 32, %v1027
        %v1029 = vshrl.u32 683565275, %v1028
        %v1030 = vshll.u32 683565275, %v1027
        %v1031 = vshrl.u32 2475754826, %v1028
        %v1032 = vor.u32 %v1030, %v1031
        %v1033 = vshll.u32 2475754826, %v1027
        %v1034 = vshrl.u32 2131351028, %v1028
        %v1035 = vor.u32 %v1033, %v1034
        %v1036 = vshll.u32 2131351028, %v1027
        %v1037 = vshrl.u32 2102212464, %v1028
        %v1038 = vor.u32 %v1036, %v1037
        %v1039 = vshll.u32 2102212464, %v1027
        %v1040 = vshrl.u32 920167782, %v1028
        %v1041 = vor.u32 %v1039, %v1040
        %v1042 = vshll.u32 920167782, %v1027
        %v1043 = vshrl.u32 1326507024, %v1028
        %v1044 = vor.u32 %v1042, %v1043
        %vm1045 = vcmp.lt.s32.totalorder %v1026, 1
        %vm1046 = vcmp.lt.s32.totalorder %v1026, 2
        %vm1047 = vcmp.lt.s32.totalorder %v1026, 3
        %vm1048 = vcmp.lt.s32.totalorder %v1026, 4
        %v1049 = vsel %vm1045, %v1029, %v1032
        %v1050 = vsel %vm1048, %v1038, 2102212464
        %v1051 = vsel %vm1047, %v1035, %v1050
        %v1052 = vsel %vm1046, %v1049, %v1051
        %v1053 = vsel %vm1045, %v1032, %v1035
        %v1054 = vsel %vm1048, %v1041, 920167782
        %v1055 = vsel %vm1047, %v1038, %v1054
        %v1056 = vsel %vm1046, %v1053, %v1055
        %v1057 = vsel %vm1045, %v1035, %v1038
        %v1058 = vsel %vm1048, %v1044, 1326507024
        %v1059 = vsel %vm1047, %v1041, %v1058
        %v1060 = vsel %vm1046, %v1057, %v1059
        %v1061 = vshll.u32 %v1021, 8
        %v1062 = vmul.u32.u64.compose %v1061, %v1060
        %v1063 = vextract.low.u32 %v1062
        %v1064 = vextract.high.u32 %v1062
        %v1065 = vmul.u32.u64.compose %v1061, %v1056
        %v1066 = vextract.low.u32 %v1065
        %v1067 = vextract.high.u32 %v1065
        %v1068 = vmul.u32 %v1061, %v1052
        %v1069 = vadd.s32 %v1064, %v1066
        %vm1070 = vc.u32 %v1064, %v1066
        %v1071 = vadd.s32 %v1067, 1
        %v1072 = vsel %vm1070, %v1071, %v1067
        %v1073 = vadd.s32 %v1068, %v1072
        %v1074 = vadd.s32 %v1073, 536870912
        %v1075 = vshrl.u32 %v1074, 30
        %v1076 = vshll.u32 %v1075, 30
        %v1077 = vsub.s32 %v1073, %v1076
        %vm1078 = vcmp.lt.s32.totalorder %v1077, 0
        %v1079 = vsub.s32 0, %v1077
        %v1080 = vsel %vm1078, %v1079, %v1077
        %v1081 = vclz %v1080
        %v1082 = vsub.s32 %v1081, 2
        %vm1083 = vcmp.gt.s32.totalorder 0, %v1082
        %v1084 = vsel %vm1083, 0, %v1082
        %v1085 = vsub.s32 32, %v1084
        %v1086 = vshll.u32 %v1077, %v1084
        %v1087 = vshrl.u32 %v1069, %v1085
        %v1088 = vor.u32 %v1086, %v1087
        %v1089 = vsub.s32 4294967266, %v1084
        %v1090 = vadd.s32 %v1089, 127
        %v1091 = vshll.u32 %v1090, 23
        %v1092 = vor.u32 4788187, %v1091
        %v1093 = vand.u32 2147483647, %v1092
        %v1095 = vcvt.s32.f32 %v1088
        %v1096 = vmul.f32 %v1095, %v1093
        %v1097 = vxor.u32 %v1096, 2147483648
        %v1098 = vsel %vm1015, %v1097, %v1096
        %v1099 = vsub.s32 4, %v1075
        %v1100 = vsel %vm1015, %v1099, %v1075
        %v1101 = vsel %vm1014, %v281, %v1098
        %v1102 = vsel %vm1014, 0, %v1100
        %v1103 = vcosq.f32.pop %v1101
        %v1104 = vsinq.f32.pop %v1101
        %vm1105 = vweird.f32 %v281
        %v1106 = vand.u32 %v1102, 3
        %vm1107 = vcmp.lt.s32.totalorder %v1106, 2
        %vm1108 = vcmp.eq.s32.totalorder %v1106, 0
        %v1109 = vxor.u32 %v1104, 2147483648
        %v1110 = vsel %vm1108, %v1103, %v1109
        %vm1111 = vcmp.eq.s32.totalorder %v1106, 2
        %v1112 = vxor.u32 %v1103, 2147483648
        %v1113 = vsel %vm1111, %v1112, %v1104
        %v1114 = vsel %vm1107, %v1110, %v1113
        %v1115 = vsel %vm1105, nan, %v1114
        %1116 = vst [vmem:[%s172] sm:$0xff] %v806
        %1117 = vst [vmem:[%s172 + $0x8] sm:$0xff] %v909
        %1118 = vst [vmem:[%s172 + $0x10] sm:$0xff] %v1012
        %1119 = vst [vmem:[%s172 + $0x18] sm:$0xff] %v1115
        %s1120 = sand.u32 %s76, 1
        %s1121 = scalar_lea.sflag [#allocation3], %s1120
        %s1122 = sand.u32 %s76, 1
        %s1123 = smul.addr %s1122, 32
        %s1124 = scalar_lea.vmem [#allocation2], %s1123
        %s1125 = sand.u32 %s102, 1
        %s1126 = scalar_lea.sflag [#allocation5], %s1125
        %s1127 = sand.u32 %s102, 1
        %s1128 = smul.addr %s1127, 32
        %s1129 = scalar_lea.vmem [#allocation4], %s1128
        // Predicated region
        $region29: #{tpu_custom_call.1} parent=27 // pred_check
          %p1130 = pneg %p86
        $region30: #{tpu_custom_call.1} parent=27 // pred_check_branch
          %1132 = sbr.rel (%p1130) target = $region32
        $region31: #{tpu_custom_call.1} parent=27 // pred_region
          %s1134 = ssub.s32 512, 512
          %1135 = vsyncadd %s1121, %s1134
          %s1136 = smul.addr %s21, 128
          %s1137 = scalar_lea.hbm %s2, %s1136
          %s1138 = sshll.u32 %s1124, 4
          %s1139 = int_to_ptr.vmem [resolvable:$true] %s1138
          %1144 = dma.vmem_to_hbm [thread:$0]  %s1139, 512, %s1137, %s1121, 128, 256, 8
        $region32: #{tpu_custom_call.1} parent=27 // pred_fallthru
          _
        // Predicated region
        $region33: #{tpu_custom_call.1} parent=27 // pred_check
          %p1145 = pneg %p112
        $region34: #{tpu_custom_call.1} parent=27 // pred_check_branch
          %1147 = sbr.rel (%p1145) target = $region36
        $region35: #{tpu_custom_call.1} parent=27 // pred_region
          %s1149 = ssub.s32 512, 512
          %1150 = vsyncadd %s1126, %s1149
          %s1151 = smul.addr %s21, 128
          %s1152 = scalar_lea.hbm %s3, %s1151
          %s1153 = sshll.u32 %s1129, 4
          %s1154 = int_to_ptr.vmem [resolvable:$true] %s1153
          %1159 = dma.vmem_to_hbm [thread:$0]  %s1154, 512, %s1152, %s1126, 128, 256, 8
        $region36: #{tpu_custom_call.1} parent=27 // pred_fallthru
          _
      $region28: #{tpu_custom_call.1} parent=5 // pred_fallthru
        _
      %p1160 = scmp.le.s32.totalorder 2, %s16
      // Predicated region
      $region37: #{tpu_custom_call.1} parent=5 // pred_check
        %p1161 = pneg %p1160
      $region38: #{tpu_custom_call.1} parent=5 // pred_check_branch
        %1163 = sbr.rel (%p1161) target = $region40
      $region39: #{tpu_custom_call.1} parent=5 // pred_region
        %s1164 = ssub.s32 %s16, 2
        // Predicated region
        $region41: #{tpu_custom_call.1} parent=39 // pred_check
          %p1165 = pneg %p92
        $region42: #{tpu_custom_call.1} parent=39 // pred_check_branch
          %1167 = sbr.rel (%p1165) target = $region44
        $region43: #{tpu_custom_call.1} parent=39 // pred_region
          %s1168 = sand.u32 %s77, 1
          %s1169 = scalar_lea.sflag [#allocation3], %s1168
          %s1170 = sand.u32 %s77, 1
          %s1171 = smul.addr %s1170, 32
          %s1172 = scalar_lea.vmem [#allocation2], %s1171
          %1173 = dma.done %s1169, 512
        $region44: #{tpu_custom_call.1} parent=39 // pred_fallthru
          _
        // Predicated region
        $region45: #{tpu_custom_call.1} parent=39 // pred_check
          %p1174 = pneg %p118
        $region46: #{tpu_custom_call.1} parent=39 // pred_check_branch
          %1176 = sbr.rel (%p1174) target = $region48
        $region47: #{tpu_custom_call.1} parent=39 // pred_region
          %s1177 = sand.u32 %s103, 1
          %s1178 = scalar_lea.sflag [#allocation5], %s1177
          %s1179 = sand.u32 %s103, 1
          %s1180 = smul.addr %s1179, 32
          %s1181 = scalar_lea.vmem [#allocation4], %s1180
          %1182 = dma.done %s1178, 512
        $region48: #{tpu_custom_call.1} parent=39 // pred_fallthru
          _
      $region40: #{tpu_custom_call.1} parent=5 // pred_fallthru
        _
    $region6: #{tpu_custom_call.1} parent=1 // loop_footer
      %s20 = sadd.s32 1, %s16
    $region7: #{tpu_custom_call.1} parent=1 // loop_footer_branch
      %15 = sbr.rel target = $region3
    $region8: #{tpu_custom_call.1} parent=1 // loop_exit
      _
    %1183 = vsyncpa [#allocation3], 1
    %s1184 = scalar_lea.sflag [#allocation3], 1
    %1185 = vsyncpa %s1184, 1
    %1186 = vsyncpa [#allocation5], 1
    %s1187 = scalar_lea.sflag [#allocation5], 1
    %1188 = vsyncpa %s1187, 1

</llo_original>
